<compile_context>
chip_gen: v7x
topology: tpu7x:2x2x1
jax: 0.10.0
libtpu: 0.0.40
codegen_flags: <defaults>
</compile_context>

<pallas_src>
import math

import jax
import jax.numpy as jnp
from jax import lax
from jax.experimental import pallas as pl
from jax.experimental.pallas import tpu as pltpu

_LANE = 128


def _round_up(x, m):
    return ((x + m - 1) // m) * m


def _make_kernel(num_heads, head_weights, tn, lane, n_pw_groups, total, needs_mask):
    n_groups = tn // 8
    rows_full = total // lane        # fully valid 128-lane rows
    rem = total % lane               # valid lanes in the single partial row (if any)

    def kernel(label_ref, posw_ref, *refs):
        pred_refs = refs[:num_heads]
        out_ref = refs[num_heads]

        tile_row0 = pl.program_id(0) * tn
        if needs_mask:
            # Hoisted out of the loop (broadcast_in_dim is not CSE'd by JAX).
            sub_iota = lax.broadcasted_iota(jnp.int32, (8, lane), 0)
            lane_iota = lax.broadcasted_iota(jnp.int32, (8, lane), 1) if rem else None

        def body(g, acc):
            r0 = pl.multiple_of(g * 8, 8)
            y = label_ref[pl.ds(r0, 8), :].astype(jnp.float32)          # (8, lane)
            if n_pw_groups == 1:
                pw = posw_ref[...]                                       # (8, lane)
            else:
                p0 = pl.multiple_of((g % n_pw_groups) * 8, 8)
                pw = posw_ref[pl.ds(p0, 8), :]
            # Head-independent coefficients, shared across all K heads.
            coef_pos = 1.0 + y * (pw - 1.0)
            coef_neg = 1.0 - y

            contrib = None
            for h in range(num_heads):
                x = pred_refs[h][pl.ds(r0, 8), :].astype(jnp.float32)
                # softplus(-x), numerically stable (exp + log1p on the EUP).
                sp_neg = jnp.log1p(jnp.exp(-jnp.abs(x))) + jnp.maximum(-x, 0.0)
                wterm = (sp_neg * coef_pos + x * coef_neg) * head_weights[h]
                contrib = wterm if contrib is None else contrib + wterm

            if needs_mask:
                # Mask rows/lanes beyond the true N*C (ragged last tile / partial row).
                row = tile_row0 + r0 + sub_iota
                mask = row < rows_full
                if rem:
                    mask = mask | ((row == rows_full) & (lane_iota < rem))
                contrib = jnp.where(mask, contrib, 0.0)
            return acc + contrib

        unroll = 4 if n_groups % 4 == 0 else (2 if n_groups % 2 == 0 else 1)
        acc0 = jnp.zeros((8, lane), jnp.float32)
        out_ref[...] = lax.fori_loop(0, n_groups, body, acc0, unroll=unroll)

    return kernel


def ensemble_bce_loss(pred_results, labels, loss_weight, pos_weight):
    """pred_results: dict name -> (N, C) logits; labels: (N, C); pos_weight: (C,)."""
    names = list(loss_weight.keys())
    # NOTE: loss weights are static module config (will raise if traced arrays).
    head_weights = tuple(float(loss_weight[nm]) for nm in names)
    num_heads = len(names)
    n, c = labels.shape
    total = n * c
    lane = _LANE
    rows = pl.cdiv(total, lane)

    # pos_weight pattern period in 128-lane rows, rounded up to whole sublane groups.
    p = c // math.gcd(c, lane)
    P = (8 * p) // math.gcd(8, p)            # lcm(8, p); (P * 128) % C == 0
    n_pw_groups = P // 8

    # Lane-dense view of every (N, C) array: pure metadata reshape when N*C % 128 == 0.
    if total % lane == 0:
        def to_rows(a):
            return a.reshape(rows, lane)
    else:
        # TODO(synk): ragged N*C pads <128 tail elements (XLA pad still copies once);
        # correctness never depends on the pad value -- the kernel masks by flat index.
        pad = rows * lane - total

        def to_rows(a):
            return jnp.pad(a.reshape(-1), (0, pad)).reshape(rows, lane)

    labels_ld = to_rows(labels)
    preds_ld = [to_rows(pred_results[nm]) for nm in names]

    # pos_weight replicated over (P, 128); since tn % P == 0 the same phase serves
    # every tile (DMA'd once, stays resident: index_map is constant).
    posw = jnp.asarray(pos_weight, dtype=jnp.float32).reshape(-1)
    posw_pat = jnp.tile(posw, (P * lane) // c).reshape(P, lane)

    # Dtype-aware tile sizing: keep the double-buffered input working set ~<= 8 MiB so
    # it fits v5e's 16 MiB scoped VMEM and stays far below v7x's 32 MiB scoped default.
    budget_bytes = 8 << 20
    bytes_per_row = lane * (labels.dtype.itemsize +
                            sum(pred_results[nm].dtype.itemsize for nm in names))
    tn = budget_bytes // (2 * bytes_per_row)
    tn = max(P, (tn // P) * P)
    tn = min(tn, max(P, _round_up(min(rows, 1024), P)))   # no gain past ~1024 rows
    # Megacore (v7x): ensure >= 2 row tiles whenever there is enough work to split.
    if rows > P and pl.cdiv(rows, tn) < 2:
        tn = max(P, _round_up(pl.cdiv(rows, 2), P))
    n_tiles = pl.cdiv(rows, tn)

    needs_mask = (n_tiles * tn * lane) != total

    # Explicit scoped-VMEM limit with 2x headroom, capped v7x-safe at 32 MiB.
    working = 2 * tn * bytes_per_row + 2 * P * lane * 4 + 2 * 8 * lane * 4
    vmem_limit = int(min(32 << 20, max(4 << 20, 2 * working)))

    partials = pl.pallas_call(
        _make_kernel(num_heads, head_weights, tn, lane, n_pw_groups, total, needs_mask),
        out_shape=jax.ShapeDtypeStruct((n_tiles * 8, lane), jnp.float32),
        grid_spec=pltpu.PrefetchScalarGridSpec(
            num_scalar_prefetch=0,
            grid=(n_tiles,),
            in_specs=[
                pl.BlockSpec((tn, lane), lambda i: (i, 0)),   # labels (once per tile)
                pl.BlockSpec((P, lane), lambda i: (0, 0)),    # pos_weight pattern (resident)
            ] + [
                pl.BlockSpec((tn, lane), lambda i: (i, 0))    # K head logits
                for _ in range(num_heads)
            ],
            out_specs=pl.BlockSpec((8, lane), lambda i: (i, 0)),  # per-tile partials
        ),
        compiler_params=pltpu.CompilerParams(
            dimension_semantics=("parallel",),                # shard tiles across TCs
            vmem_limit_bytes=vmem_limit),
    )(labels_ld, posw_pat, *preds_ld)

    # Global mean over the true (unpadded) element count, applied exactly once.
    return jnp.sum(partials) / jnp.float32(total)


def _reference_loss(pred_results, labels, loss_weight, pos_weight):
    """Plain-JAX reference of sum_k w_k * BCEWithLogits(pred_k, labels, pos_weight)."""
    total = jnp.float32(0.0)
    for name, w in loss_weight.items():
        x = pred_results[name].astype(jnp.float32)
        y = labels.astype(jnp.float32)
        sp_neg = jnp.logaddexp(0.0, -x)   # softplus(-x)
        sp_pos = jnp.logaddexp(0.0, x)    # softplus(x)
        per = pos_weight[None, :] * y * sp_neg + (1.0 - y) * sp_pos
        total = total + jnp.float32(w) * jnp.mean(per)
    return total


if __name__ == "__main__":
    # Module config implied by __init__: loss_weight dict + pos_weight list.
    loss_weight = {"head_a": 0.5, "head_b": 1.0, "head_c": 0.25}
    N, C = 72, 32   # rows=18 -> 2 tiles, exercises ragged-tail masking + megacore split
    pos_weight = jnp.asarray([1.0 + 0.1 * i for i in range(C)], dtype=jnp.float32)

    key = jax.random.PRNGKey(0)
    k_a, k_b, k_c, k_l = jax.random.split(key, 4)
    pred_results = {
        "head_a": jax.random.normal(k_a, (N, C), dtype=jnp.float32),
        "head_b": jax.random.normal(k_b, (N, C), dtype=jnp.float32),
        "head_c": jax.random.normal(k_c, (N, C), dtype=jnp.float32),
    }
    labels = (jax.random.uniform(k_l, (N, C)) > 0.5).astype(jnp.float32)

    loss = jax.block_until_ready(
        ensemble_bce_loss(pred_results, labels, loss_weight, pos_weight))
    ref = jax.block_until_ready(
        _reference_loss(pred_results, labels, loss_weight, pos_weight))

    assert jnp.allclose(loss, ref, rtol=1e-5, atol=1e-5), (loss, ref)
    print("KERNEL_OK")
</pallas_src>

<mosaic_0001>
module attributes {stable_mosaic.version = 11 : i64} {
  func.func @kernel(%arg0: i32, %arg1: memref<16x128xf32, #tpu.memory_space<vmem>>, %arg2: memref<8x128xf32, #tpu.memory_space<vmem>>, %arg3: memref<16x128xf32, #tpu.memory_space<vmem>>, %arg4: memref<16x128xf32, #tpu.memory_space<vmem>>, %arg5: memref<16x128xf32, #tpu.memory_space<vmem>>, %arg6: memref<8x128xf32, #tpu.memory_space<vmem>>) attributes {dimension_semantics = [#tpu.dimension_semantics<parallel>], iteration_bounds = array<i64: 2>, scalar_prefetch = 0 : i64, scratch_operands = 0 : i64, tpu.core_type = #tpu.core_type<tc>, window_params = [{transform_indices = @transform_0, window_bounds = array<i64: 16, 128>}, {pipeline_mode = #tpu.pipeline_mode<synchronous>, transform_indices = @transform_1, window_bounds = array<i64: 8, 128>}, {transform_indices = @transform_2, window_bounds = array<i64: 16, 128>}, {transform_indices = @transform_3, window_bounds = array<i64: 16, 128>}, {transform_indices = @transform_4, window_bounds = array<i64: 16, 128>}, {transform_indices = @transform_5, window_bounds = array<i64: 8, 128>}]} {
    %c16_i32 = arith.constant 16 : i32
    %0 = arith.muli %arg0, %c16_i32 : i32
    %1 = tpu.iota {dimensions = array<i32: 0>} : vector<8x128xi32>
    %cst = arith.constant 0.000000e+00 : f32
    %2 = vector.broadcast %cst : f32 to vector<8x128xf32>
    %c0_i32 = arith.constant 0 : i32
    %c8_i32 = arith.constant 8 : i32
    %3 = arith.muli %c0_i32, %c8_i32 : i32
    %4 = tpu.assume_multiple %3, 8 : i32
    %5 = arith.index_cast %4 : i32 to index
    %c0 = arith.constant 0 : index
    %6 = vector.load %arg1[%5, %c0] : memref<16x128xf32, #tpu.memory_space<vmem>>, vector<8x128xf32>
    %c0_0 = arith.constant 0 : index
    %c0_1 = arith.constant 0 : index
    %7 = vector.load %arg2[%c0_0, %c0_1] : memref<8x128xf32, #tpu.memory_space<vmem>>, vector<8x128xf32>
    %cst_2 = arith.constant 1.000000e+00 : f32
    %8 = vector.broadcast %cst_2 : f32 to vector<8x128xf32>
    %9 = arith.subf %7, %8 : vector<8x128xf32>
    %10 = arith.mulf %6, %9 : vector<8x128xf32>
    %cst_3 = arith.constant 1.000000e+00 : f32
    %11 = vector.broadcast %cst_3 : f32 to vector<8x128xf32>
    %12 = arith.addf %11, %10 : vector<8x128xf32>
    %cst_4 = arith.constant 1.000000e+00 : f32
    %13 = vector.broadcast %cst_4 : f32 to vector<8x128xf32>
    %14 = arith.subf %13, %6 : vector<8x128xf32>
    %15 = arith.index_cast %4 : i32 to index
    %c0_5 = arith.constant 0 : index
    %16 = vector.load %arg3[%15, %c0_5] : memref<16x128xf32, #tpu.memory_space<vmem>>, vector<8x128xf32>
    %17 = math.absf %16 : vector<8x128xf32>
    %cst_6 = arith.constant 0.000000e+00 : f32
    %18 = vector.broadcast %cst_6 : f32 to vector<8x128xf32>
    %19 = arith.subf %18, %17 : vector<8x128xf32>
    %20 = math.exp %19 : vector<8x128xf32>
    %21 = math.log1p %20 : vector<8x128xf32>
    %cst_7 = arith.constant 0.000000e+00 : f32
    %22 = vector.broadcast %cst_7 : f32 to vector<8x128xf32>
    %23 = arith.subf %22, %16 : vector<8x128xf32>
    %cst_8 = arith.constant 0.000000e+00 : f32
    %24 = vector.broadcast %cst_8 : f32 to vector<8x128xf32>
    %25 = arith.maximumf %23, %24 : vector<8x128xf32>
    %26 = arith.addf %21, %25 : vector<8x128xf32>
    %27 = arith.mulf %26, %12 : vector<8x128xf32>
    %28 = arith.mulf %16, %14 : vector<8x128xf32>
    %29 = arith.addf %27, %28 : vector<8x128xf32>
    %cst_9 = arith.constant 5.000000e-01 : f32
    %30 = vector.broadcast %cst_9 : f32 to vector<8x128xf32>
    %31 = arith.mulf %29, %30 : vector<8x128xf32>
    %32 = arith.index_cast %4 : i32 to index
    %c0_10 = arith.constant 0 : index
    %33 = vector.load %arg4[%32, %c0_10] : memref<16x128xf32, #tpu.memory_space<vmem>>, vector<8x128xf32>
    %34 = math.absf %33 : vector<8x128xf32>
    %cst_11 = arith.constant 0.000000e+00 : f32
    %35 = vector.broadcast %cst_11 : f32 to vector<8x128xf32>
    %36 = arith.subf %35, %34 : vector<8x128xf32>
    %37 = math.exp %36 : vector<8x128xf32>
    %38 = math.log1p %37 : vector<8x128xf32>
    %cst_12 = arith.constant 0.000000e+00 : f32
    %39 = vector.broadcast %cst_12 : f32 to vector<8x128xf32>
    %40 = arith.subf %39, %33 : vector<8x128xf32>
    %cst_13 = arith.constant 0.000000e+00 : f32
    %41 = vector.broadcast %cst_13 : f32 to vector<8x128xf32>
    %42 = arith.maximumf %40, %41 : vector<8x128xf32>
    %43 = arith.addf %38, %42 : vector<8x128xf32>
    %44 = arith.mulf %43, %12 : vector<8x128xf32>
    %45 = arith.mulf %33, %14 : vector<8x128xf32>
    %46 = arith.addf %44, %45 : vector<8x128xf32>
    %cst_14 = arith.constant 1.000000e+00 : f32
    %47 = vector.broadcast %cst_14 : f32 to vector<8x128xf32>
    %48 = arith.mulf %46, %47 : vector<8x128xf32>
    %49 = arith.addf %31, %48 : vector<8x128xf32>
    %50 = arith.index_cast %4 : i32 to index
    %c0_15 = arith.constant 0 : index
    %51 = vector.load %arg5[%50, %c0_15] : memref<16x128xf32, #tpu.memory_space<vmem>>, vector<8x128xf32>
    %52 = math.absf %51 : vector<8x128xf32>
    %cst_16 = arith.constant 0.000000e+00 : f32
    %53 = vector.broadcast %cst_16 : f32 to vector<8x128xf32>
    %54 = arith.subf %53, %52 : vector<8x128xf32>
    %55 = math.exp %54 : vector<8x128xf32>
    %56 = math.log1p %55 : vector<8x128xf32>
    %cst_17 = arith.constant 0.000000e+00 : f32
    %57 = vector.broadcast %cst_17 : f32 to vector<8x128xf32>
    %58 = arith.subf %57, %51 : vector<8x128xf32>
    %cst_18 = arith.constant 0.000000e+00 : f32
    %59 = vector.broadcast %cst_18 : f32 to vector<8x128xf32>
    %60 = arith.maximumf %58, %59 : vector<8x128xf32>
    %61 = arith.addf %56, %60 : vector<8x128xf32>
    %62 = arith.mulf %61, %12 : vector<8x128xf32>
    %63 = arith.mulf %51, %14 : vector<8x128xf32>
    %64 = arith.addf %62, %63 : vector<8x128xf32>
    %cst_19 = arith.constant 2.500000e-01 : f32
    %65 = vector.broadcast %cst_19 : f32 to vector<8x128xf32>
    %66 = arith.mulf %64, %65 : vector<8x128xf32>
    %67 = arith.addf %49, %66 : vector<8x128xf32>
    %68 = arith.addi %0, %4 : i32
    %69 = vector.broadcast %68 : i32 to vector<8x128xi32>
    %70 = arith.addi %69, %1 : vector<8x128xi32>
    %c18_i32 = arith.constant 18 : i32
    %71 = vector.broadcast %c18_i32 : i32 to vector<8x128xi32>
    %72 = arith.cmpi slt, %70, %71 : vector<8x128xi32>
    %cst_20 = arith.constant 0.000000e+00 : f32
    %73 = vector.broadcast %cst_20 : f32 to vector<8x128xf32>
    %74 = arith.select %72, %67, %73 : vector<8x128xi1>, vector<8x128xf32>
    %75 = arith.addf %2, %74 : vector<8x128xf32>
    %c1_i32 = arith.constant 1 : i32
    %c8_i32_21 = arith.constant 8 : i32
    %76 = arith.muli %c1_i32, %c8_i32_21 : i32
    %77 = tpu.assume_multiple %76, 8 : i32
    %78 = arith.index_cast %77 : i32 to index
    %c0_22 = arith.constant 0 : index
    %79 = vector.load %arg1[%78, %c0_22] : memref<16x128xf32, #tpu.memory_space<vmem>>, vector<8x128xf32>
    %c0_23 = arith.constant 0 : index
    %c0_24 = arith.constant 0 : index
    %80 = vector.load %arg2[%c0_23, %c0_24] : memref<8x128xf32, #tpu.memory_space<vmem>>, vector<8x128xf32>
    %cst_25 = arith.constant 1.000000e+00 : f32
    %81 = vector.broadcast %cst_25 : f32 to vector<8x128xf32>
    %82 = arith.subf %80, %81 : vector<8x128xf32>
    %83 = arith.mulf %79, %82 : vector<8x128xf32>
    %cst_26 = arith.constant 1.000000e+00 : f32
    %84 = vector.broadcast %cst_26 : f32 to vector<8x128xf32>
    %85 = arith.addf %84, %83 : vector<8x128xf32>
    %cst_27 = arith.constant 1.000000e+00 : f32
    %86 = vector.broadcast %cst_27 : f32 to vector<8x128xf32>
    %87 = arith.subf %86, %79 : vector<8x128xf32>
    %88 = arith.index_cast %77 : i32 to index
    %c0_28 = arith.constant 0 : index
    %89 = vector.load %arg3[%88, %c0_28] : memref<16x128xf32, #tpu.memory_space<vmem>>, vector<8x128xf32>
    %90 = math.absf %89 : vector<8x128xf32>
    %cst_29 = arith.constant 0.000000e+00 : f32
    %91 = vector.broadcast %cst_29 : f32 to vector<8x128xf32>
    %92 = arith.subf %91, %90 : vector<8x128xf32>
    %93 = math.exp %92 : vector<8x128xf32>
    %94 = math.log1p %93 : vector<8x128xf32>
    %cst_30 = arith.constant 0.000000e+00 : f32
    %95 = vector.broadcast %cst_30 : f32 to vector<8x128xf32>
    %96 = arith.subf %95, %89 : vector<8x128xf32>
    %cst_31 = arith.constant 0.000000e+00 : f32
    %97 = vector.broadcast %cst_31 : f32 to vector<8x128xf32>
    %98 = arith.maximumf %96, %97 : vector<8x128xf32>
    %99 = arith.addf %94, %98 : vector<8x128xf32>
    %100 = arith.mulf %99, %85 : vector<8x128xf32>
    %101 = arith.mulf %89, %87 : vector<8x128xf32>
    %102 = arith.addf %100, %101 : vector<8x128xf32>
    %cst_32 = arith.constant 5.000000e-01 : f32
    %103 = vector.broadcast %cst_32 : f32 to vector<8x128xf32>
    %104 = arith.mulf %102, %103 : vector<8x128xf32>
    %105 = arith.index_cast %77 : i32 to index
    %c0_33 = arith.constant 0 : index
    %106 = vector.load %arg4[%105, %c0_33] : memref<16x128xf32, #tpu.memory_space<vmem>>, vector<8x128xf32>
    %107 = math.absf %106 : vector<8x128xf32>
    %cst_34 = arith.constant 0.000000e+00 : f32
    %108 = vector.broadcast %cst_34 : f32 to vector<8x128xf32>
    %109 = arith.subf %108, %107 : vector<8x128xf32>
    %110 = math.exp %109 : vector<8x128xf32>
    %111 = math.log1p %110 : vector<8x128xf32>
    %cst_35 = arith.constant 0.000000e+00 : f32
    %112 = vector.broadcast %cst_35 : f32 to vector<8x128xf32>
    %113 = arith.subf %112, %106 : vector<8x128xf32>
    %cst_36 = arith.constant 0.000000e+00 : f32
    %114 = vector.broadcast %cst_36 : f32 to vector<8x128xf32>
    %115 = arith.maximumf %113, %114 : vector<8x128xf32>
    %116 = arith.addf %111, %115 : vector<8x128xf32>
    %117 = arith.mulf %116, %85 : vector<8x128xf32>
    %118 = arith.mulf %106, %87 : vector<8x128xf32>
    %119 = arith.addf %117, %118 : vector<8x128xf32>
    %cst_37 = arith.constant 1.000000e+00 : f32
    %120 = vector.broadcast %cst_37 : f32 to vector<8x128xf32>
    %121 = arith.mulf %119, %120 : vector<8x128xf32>
    %122 = arith.addf %104, %121 : vector<8x128xf32>
    %123 = arith.index_cast %77 : i32 to index
    %c0_38 = arith.constant 0 : index
    %124 = vector.load %arg5[%123, %c0_38] : memref<16x128xf32, #tpu.memory_space<vmem>>, vector<8x128xf32>
    %125 = math.absf %124 : vector<8x128xf32>
    %cst_39 = arith.constant 0.000000e+00 : f32
    %126 = vector.broadcast %cst_39 : f32 to vector<8x128xf32>
    %127 = arith.subf %126, %125 : vector<8x128xf32>
    %128 = math.exp %127 : vector<8x128xf32>
    %129 = math.log1p %128 : vector<8x128xf32>
    %cst_40 = arith.constant 0.000000e+00 : f32
    %130 = vector.broadcast %cst_40 : f32 to vector<8x128xf32>
    %131 = arith.subf %130, %124 : vector<8x128xf32>
    %cst_41 = arith.constant 0.000000e+00 : f32
    %132 = vector.broadcast %cst_41 : f32 to vector<8x128xf32>
    %133 = arith.maximumf %131, %132 : vector<8x128xf32>
    %134 = arith.addf %129, %133 : vector<8x128xf32>
    %135 = arith.mulf %134, %85 : vector<8x128xf32>
    %136 = arith.mulf %124, %87 : vector<8x128xf32>
    %137 = arith.addf %135, %136 : vector<8x128xf32>
    %cst_42 = arith.constant 2.500000e-01 : f32
    %138 = vector.broadcast %cst_42 : f32 to vector<8x128xf32>
    %139 = arith.mulf %137, %138 : vector<8x128xf32>
    %140 = arith.addf %122, %139 : vector<8x128xf32>
    %141 = arith.addi %0, %77 : i32
    %142 = vector.broadcast %141 : i32 to vector<8x128xi32>
    %143 = arith.addi %142, %1 : vector<8x128xi32>
    %c18_i32_43 = arith.constant 18 : i32
    %144 = vector.broadcast %c18_i32_43 : i32 to vector<8x128xi32>
    %145 = arith.cmpi slt, %143, %144 : vector<8x128xi32>
    %cst_44 = arith.constant 0.000000e+00 : f32
    %146 = vector.broadcast %cst_44 : f32 to vector<8x128xf32>
    %147 = arith.select %145, %140, %146 : vector<8x128xi1>, vector<8x128xf32>
    %148 = arith.addf %75, %147 : vector<8x128xf32>
    %c2_i32 = arith.constant 2 : i32
    %c0_45 = arith.constant 0 : index
    %c0_46 = arith.constant 0 : index
    %149 = vector.load %arg6[%c0_45, %c0_46] : memref<8x128xf32, #tpu.memory_space<vmem>>, vector<8x128xf32>
    tpu.vector_store %arg6[%c0_45, %c0_46], %148 {strides = array<i32>} : memref<8x128xf32, #tpu.memory_space<vmem>>, vector<8x128xf32>,
    return
  }
  func.func @transform_0(%arg0: i32) -> (i32, i32) {
    %c0_i32 = arith.constant 0 : i32
    %c0_i32_0 = arith.constant 0 : i32
    return %arg0, %c0_i32 : i32, i32
  }
  func.func @transform_1(%arg0: i32) -> (i32, i32) {
    %c0_i32 = arith.constant 0 : i32
    %c0_i32_0 = arith.constant 0 : i32
    %c0_i32_1 = arith.constant 0 : i32
    return %c0_i32, %c0_i32_0 : i32, i32
  }
  func.func @transform_2(%arg0: i32) -> (i32, i32) {
    %c0_i32 = arith.constant 0 : i32
    %c0_i32_0 = arith.constant 0 : i32
    return %arg0, %c0_i32 : i32, i32
  }
  func.func @transform_3(%arg0: i32) -> (i32, i32) {
    %c0_i32 = arith.constant 0 : i32
    %c0_i32_0 = arith.constant 0 : i32
    return %arg0, %c0_i32 : i32, i32
  }
  func.func @transform_4(%arg0: i32) -> (i32, i32) {
    %c0_i32 = arith.constant 0 : i32
    %c0_i32_0 = arith.constant 0 : i32
    return %arg0, %c0_i32 : i32, i32
  }
  func.func @transform_5(%arg0: i32) -> (i32, i32) {
    %c0_i32 = arith.constant 0 : i32
    %c0_i32_0 = arith.constant 0 : i32
    return %arg0, %c0_i32 : i32, i32
  }
}

</mosaic_0001>

<llo_original>
// kernel: tpu_custom_call.1
$region0: #{tpu_custom_call.1}
  #allocation0 [shape = 'u32[]', space=smem, size = 0x4, offset = 0x4, fixed_abs, tag = 'smem constant byte address 0x4 - core index']
  #allocation1 [shape = 'u32[144,128]{1,0:T(1,128)}', space=vmem, size = 0x12000, scoped, tag = 'internal scratch']
  %s0 = inlined_call_operand.hbm [shape: f32[18,128], index: 0, kind: input, shape index: {}]
  %s1 = inlined_call_operand.hbm [shape: f32[8,128], index: 1, kind: input, shape index: {}]
  %s2 = inlined_call_operand.hbm [shape: f32[18,128], index: 2, kind: input, shape index: {}]
  %s3 = inlined_call_operand.hbm [shape: f32[18,128], index: 3, kind: input, shape index: {}]
  %s4 = inlined_call_operand.hbm [shape: f32[18,128], index: 4, kind: input, shape index: {}]
  %s5 = inlined_call_operand.hbm [shape: f32[16,128], index: 5, kind: output, shape index: {}]
  %s6 = sld [smem:[#allocation0]]
  $region73: #{tpu_custom_call.1} parent=0
    _
  %s8 = ssub.s32 1, %s6
  %s9 = scalar_select 0, %s8, %s6
  $region1: #{tpu_custom_call.1} parent=0
    #allocation2 [shape = 'u8[16384]{0}', space=vmem, size = 0x4000, scoped, tag = 'input window, operand 0']
    #allocation3 [shape = 's32[2]{0}', space=sflag, size = 0x8, scoped, tag = 'scoped memory for tpu_custom_call.1']
    #allocation4 [shape = 's32[2]{0}', space=sflag, size = 0x8, scoped, tag = 'scoped memory for tpu_custom_call.1']
    #allocation5 [shape = 'u8[4096]{0}', space=vmem, size = 0x1000, scoped, tag = 'input window, operand 1, single buffered']
    #allocation6 [shape = 's32[1]{0}', space=sflag, size = 0x4, scoped, tag = 'scoped memory for tpu_custom_call.1']
    #allocation7 [shape = 'u8[16384]{0}', space=vmem, size = 0x4000, scoped, tag = 'input window, operand 2']
    #allocation8 [shape = 'u8[16384]{0}', space=vmem, size = 0x4000, scoped, tag = 'input window, operand 3']
    #allocation9 [shape = 'u8[16384]{0}', space=vmem, size = 0x4000, scoped, tag = 'input window, operand 4']
    #allocation10 [shape = 'u8[8192]{0}', space=vmem, size = 0x2000, scoped, tag = 'output window, operand 0']
    %10 = vsyncpa [#allocation3], 0
    %s11 = scalar_lea.sflag [#allocation3], 1
    %12 = vsyncpa %s11, 0
    %13 = vsyncpa [#allocation6], 0
    %14 = vsyncpa [#allocation4], 0
    %s15 = scalar_lea.sflag [#allocation4], 1
    %16 = vsyncpa %s15, 0
    loop: start=0, step=1, limit=4
    $region2: #{tpu_custom_call.1} parent=1 // loop_pre_header
      _
    $region3: #{tpu_custom_call.1} parent=1 // loop_header
      %s18 = sphi 0, %s22
      %p19 = scmp.ge.s32.totalorder %s18, 4
      %s28 = sphi 0, %s30
      %s31 = sphi 0, %s28
      %s32 = sphi 0, %s31
      %s48 = sphi 0, %s32
      %s52 = sphi 0, %s52
      %s54 = sphi 0, %s52
      %s55 = sphi 0, %s54
      %s69 = sphi 0, %s55
      %s75 = sphi 0, %s77
      %s78 = sphi 0, %s75
      %s79 = sphi 0, %s78
      %s95 = sphi 0, %s79
      %s101 = sphi 0, %s103
      %s104 = sphi 0, %s101
      %s105 = sphi 0, %s104
      %s121 = sphi 0, %s105
      %s127 = sphi 0, %s129
      %s130 = sphi 0, %s127
      %s131 = sphi 0, %s130
      %s147 = sphi 0, %s131
      %s153 = sphi 0, %s155
      %s156 = sphi 0, %s153
      %s157 = sphi 0, %s156
      %s173 = sphi 0, %s157
    $region4: #{tpu_custom_call.1} parent=1 // loop_header_branch
      %21 = sbr.rel (%p19) target = $region8
    $region5: #{tpu_custom_call.1} parent=1 // loop_body
      %s23 = ssub.s32 %s18, 1
      %s24 = ssub.s32 %s18, 2
      %s25 = sadd.s32 %s18, 1
      %s26 = ssub.s32 %s18, %s25
      %p27 = scmp.eq.s32.totalorder %s26, 0
      %s29 = sadd.s32 %s28, 1
      %s30 = scalar_select %p27, %s28, %s29
      %p33 = pneg %p27
      %p34 = scmp.eq.s32.totalorder %s18, 1
      %p35 = por %p33, %p34
      %p36 = scmp.ne.s32.totalorder %s28, %s31
      %p37 = scmp.eq.s32.totalorder %s18, 0
      %p38 = por %p36, %p37
      %p39 = scmp.ne.s32.totalorder %s28, %s31
      %p40 = scmp.eq.s32.totalorder %s23, 1
      %p41 = por %p39, %p40
      %p42 = scmp.ne.s32.totalorder %s31, %s32
      %p43 = scmp.eq.s32.totalorder %s23, 0
      %p44 = por %p42, %p43
      %p45 = scmp.ne.s32.totalorder %s31, %s32
      %p46 = scmp.eq.s32.totalorder %s24, 1
      %p47 = por %p45, %p46
      %p49 = scmp.ne.s32.totalorder %s32, %s48
      %p50 = scmp.eq.s32.totalorder %s24, 0
      %p51 = por %p49, %p50
      %s53 = sadd.s32 %s52, 1
      %p56 = scmp.eq.s32.totalorder %s18, 1
      %p57 = scmp.ne.s32.totalorder %s52, %s54
      %p58 = scmp.eq.s32.totalorder %s18, 0
      %p59 = por %p57, %p58
      %p60 = scmp.ne.s32.totalorder %s52, %s54
      %p61 = scmp.eq.s32.totalorder %s23, 1
      %p62 = por %p60, %p61
      %p63 = scmp.ne.s32.totalorder %s54, %s55
      %p64 = scmp.eq.s32.totalorder %s23, 0
      %p65 = por %p63, %p64
      %p66 = scmp.ne.s32.totalorder %s54, %s55
      %p67 = scmp.eq.s32.totalorder %s24, 1
      %p68 = por %p66, %p67
      %p70 = scmp.ne.s32.totalorder %s55, %s69
      %p71 = scmp.eq.s32.totalorder %s24, 0
      %p72 = por %p70, %p71
      %s73 = ssub.s32 %s18, %s25
      %p74 = scmp.eq.s32.totalorder %s73, 0
      %s76 = sadd.s32 %s75, 1
      %s77 = scalar_select %p74, %s75, %s76
      %p80 = pneg %p74
      %p81 = scmp.eq.s32.totalorder %s18, 1
      %p82 = por %p80, %p81
      %p83 = scmp.ne.s32.totalorder %s75, %s78
      %p84 = scmp.eq.s32.totalorder %s18, 0
      %p85 = por %p83, %p84
      %p86 = scmp.ne.s32.totalorder %s75, %s78
      %p87 = scmp.eq.s32.totalorder %s23, 1
      %p88 = por %p86, %p87
      %p89 = scmp.ne.s32.totalorder %s78, %s79
      %p90 = scmp.eq.s32.totalorder %s23, 0
      %p91 = por %p89, %p90
      %p92 = scmp.ne.s32.totalorder %s78, %s79
      %p93 = scmp.eq.s32.totalorder %s24, 1
      %p94 = por %p92, %p93
      %p96 = scmp.ne.s32.totalorder %s79, %s95
      %p97 = scmp.eq.s32.totalorder %s24, 0
      %p98 = por %p96, %p97
      %s99 = ssub.s32 %s18, %s25
      %p100 = scmp.eq.s32.totalorder %s99, 0
      %s102 = sadd.s32 %s101, 1
      %s103 = scalar_select %p100, %s101, %s102
      %p106 = pneg %p100
      %p107 = scmp.eq.s32.totalorder %s18, 1
      %p108 = por %p106, %p107
      %p109 = scmp.ne.s32.totalorder %s101, %s104
      %p110 = scmp.eq.s32.totalorder %s18, 0
      %p111 = por %p109, %p110
      %p112 = scmp.ne.s32.totalorder %s101, %s104
      %p113 = scmp.eq.s32.totalorder %s23, 1
      %p114 = por %p112, %p113
      %p115 = scmp.ne.s32.totalorder %s104, %s105
      %p116 = scmp.eq.s32.totalorder %s23, 0
      %p117 = por %p115, %p116
      %p118 = scmp.ne.s32.totalorder %s104, %s105
      %p119 = scmp.eq.s32.totalorder %s24, 1
      %p120 = por %p118, %p119
      %p122 = scmp.ne.s32.totalorder %s105, %s121
      %p123 = scmp.eq.s32.totalorder %s24, 0
      %p124 = por %p122, %p123
      %s125 = ssub.s32 %s18, %s25
      %p126 = scmp.eq.s32.totalorder %s125, 0
      %s128 = sadd.s32 %s127, 1
      %s129 = scalar_select %p126, %s127, %s128
      %p132 = pneg %p126
      %p133 = scmp.eq.s32.totalorder %s18, 1
      %p134 = por %p132, %p133
      %p135 = scmp.ne.s32.totalorder %s127, %s130
      %p136 = scmp.eq.s32.totalorder %s18, 0
      %p137 = por %p135, %p136
      %p138 = scmp.ne.s32.totalorder %s127, %s130
      %p139 = scmp.eq.s32.totalorder %s23, 1
      %p140 = por %p138, %p139
      %p141 = scmp.ne.s32.totalorder %s130, %s131
      %p142 = scmp.eq.s32.totalorder %s23, 0
      %p143 = por %p141, %p142
      %p144 = scmp.ne.s32.totalorder %s130, %s131
      %p145 = scmp.eq.s32.totalorder %s24, 1
      %p146 = por %p144, %p145
      %p148 = scmp.ne.s32.totalorder %s131, %s147
      %p149 = scmp.eq.s32.totalorder %s24, 0
      %p150 = por %p148, %p149
      %s151 = ssub.s32 %s18, %s25
      %p152 = scmp.eq.s32.totalorder %s151, 0
      %s154 = sadd.s32 %s153, 1
      %s155 = scalar_select %p152, %s153, %s154
      %p158 = pneg %p152
      %p159 = scmp.eq.s32.totalorder %s18, 1
      %p160 = por %p158, %p159
      %p161 = scmp.ne.s32.totalorder %s153, %s156
      %p162 = scmp.eq.s32.totalorder %s18, 0
      %p163 = por %p161, %p162
      %p164 = scmp.ne.s32.totalorder %s153, %s156
      %p165 = scmp.eq.s32.totalorder %s23, 1
      %p166 = por %p164, %p165
      %p167 = scmp.ne.s32.totalorder %s156, %s157
      %p168 = scmp.eq.s32.totalorder %s23, 0
      %p169 = por %p167, %p168
      %p170 = scmp.ne.s32.totalorder %s156, %s157
      %p171 = scmp.eq.s32.totalorder %s24, 1
      %p172 = por %p170, %p171
      %p174 = scmp.ne.s32.totalorder %s157, %s173
      %p175 = scmp.eq.s32.totalorder %s24, 0
      %p176 = por %p174, %p175
      %p177 = scmp.le.s32.totalorder 1, %s18
      %p178 = scmp.lt.s32.totalorder %s18, 3
      %p179 = pnand %p177, %p178
      %p180 = pneg %p179
      // Predicated region
      $region9: #{tpu_custom_call.1} parent=5 // pred_check
        _
      $region10: #{tpu_custom_call.1} parent=5 // pred_check_branch
        %182 = sbr.rel (%p179) target = $region12
      $region11: #{tpu_custom_call.1} parent=5 // pred_region
        %s183 = ssub.s32 %s18, 1
        // Predicated region
        $region13: #{tpu_custom_call.1} parent=11 // pred_check
          %p184 = pneg %p65
        $region14: #{tpu_custom_call.1} parent=11 // pred_check_branch
          %186 = sbr.rel (%p184) target = $region16
        $region15: #{tpu_custom_call.1} parent=11 // pred_region
          %s188 = ssub.s32 128, 128
          %189 = vsyncadd [#allocation6], %s188
          %s191 = sshll.u32 [#allocation5], 4
          %s192 = int_to_ptr.vmem [resolvable:$true] %s191
          %194 = dma.hbm_to_vmem [thread:$0]  %s1, 128, %s192, [#allocation6]
        $region16: #{tpu_custom_call.1} parent=11 // pred_fallthru
          _
      $region12: #{tpu_custom_call.1} parent=5 // pred_fallthru
        _
      %p195 = scmp.lt.s32.totalorder %s18, 2
      // Predicated region
      $region17: #{tpu_custom_call.1} parent=5 // pred_check
        %p196 = pneg %p195
      $region18: #{tpu_custom_call.1} parent=5 // pred_check_branch
        %198 = sbr.rel (%p196) target = $region20
      $region19: #{tpu_custom_call.1} parent=5 // pred_region
        // Predicated region
        $region21: #{tpu_custom_call.1} parent=19 // pred_check
          %p199 = pneg %p38
        $region22: #{tpu_custom_call.1} parent=19 // pred_check_branch
          %201 = sbr.rel (%p199) target = $region24
        $region23: #{tpu_custom_call.1} parent=19 // pred_region
          %s202 = sand.u32 %s18, 1
          %s203 = scalar_lea.sflag [#allocation3], %s202
          %s204 = sand.u32 %s28, 1
          %s205 = smul.addr %s204, 16
          %s206 = scalar_lea.vmem [#allocation2], %s205
          %s207 = smul.u32 2, %s18
          %s208 = ssub.s32 3, %s207
          %p209 = scmp.lt.s32.totalorder %s208, 2
          %s210 = scalar_select %p209, %s208, 2
          %s211 = smul.u32 128, %s210
          %s213 = ssub.s32 256, %s211
          %214 = vsyncadd %s203, %s213
          %p215 = scmp.ne.s32.totalorder 0, %s211
          %s216 = smul.addr %s207, 128
          %s217 = scalar_lea.hbm %s0, %s216
          %s218 = smul.u32 8, %s210
          %s219 = sshll.u32 %s206, 4
          %s220 = int_to_ptr.vmem [resolvable:$true] %s219
          %s221 = sshll.u32 %s218, 4
          %225 = dma.hbm_to_vmem [thread:$0]  (%p215), %s217, %s221, %s220, %s203, 128, 128, 8
        $region24: #{tpu_custom_call.1} parent=19 // pred_fallthru
          _
        // Predicated region
        $region25: #{tpu_custom_call.1} parent=19 // pred_check
          %p226 = pneg %p85
        $region26: #{tpu_custom_call.1} parent=19 // pred_check_branch
          %228 = sbr.rel (%p226) target = $region28
        $region27: #{tpu_custom_call.1} parent=19 // pred_region
          %s229 = sand.u32 %s18, 1
          %s230 = scalar_lea.sflag [#allocation3], %s229
          %s231 = sand.u32 %s75, 1
          %s232 = smul.addr %s231, 16
          %s233 = scalar_lea.vmem [#allocation7], %s232
          %s234 = smul.u32 2, %s18
          %s235 = ssub.s32 3, %s234
          %p236 = scmp.lt.s32.totalorder %s235, 2
          %s237 = scalar_select %p236, %s235, 2
          %s238 = smul.u32 128, %s237
          %s240 = ssub.s32 256, %s238
          %241 = vsyncadd %s230, %s240
          %p242 = scmp.ne.s32.totalorder 0, %s238
          %s243 = smul.addr %s234, 128
          %s244 = scalar_lea.hbm %s2, %s243
          %s245 = smul.u32 8, %s237
          %s246 = sshll.u32 %s233, 4
          %s247 = int_to_ptr.vmem [resolvable:$true] %s246
          %s248 = sshll.u32 %s245, 4
          %252 = dma.hbm_to_vmem [thread:$0]  (%p242), %s244, %s248, %s247, %s230, 128, 128, 8
        $region28: #{tpu_custom_call.1} parent=19 // pred_fallthru
          _
        // Predicated region
        $region29: #{tpu_custom_call.1} parent=19 // pred_check
          %p253 = pneg %p111
        $region30: #{tpu_custom_call.1} parent=19 // pred_check_branch
          %255 = sbr.rel (%p253) target = $region32
        $region31: #{tpu_custom_call.1} parent=19 // pred_region
          %s256 = sand.u32 %s18, 1
          %s257 = scalar_lea.sflag [#allocation3], %s256
          %s258 = sand.u32 %s101, 1
          %s259 = smul.addr %s258, 16
          %s260 = scalar_lea.vmem [#allocation8], %s259
          %s261 = smul.u32 2, %s18
          %s262 = ssub.s32 3, %s261
          %p263 = scmp.lt.s32.totalorder %s262, 2
          %s264 = scalar_select %p263, %s262, 2
          %s265 = smul.u32 128, %s264
          %s267 = ssub.s32 256, %s265
          %268 = vsyncadd %s257, %s267
          %p269 = scmp.ne.s32.totalorder 0, %s265
          %s270 = smul.addr %s261, 128
          %s271 = scalar_lea.hbm %s3, %s270
          %s272 = smul.u32 8, %s264
          %s273 = sshll.u32 %s260, 4
          %s274 = int_to_ptr.vmem [resolvable:$true] %s273
          %s275 = sshll.u32 %s272, 4
          %279 = dma.hbm_to_vmem [thread:$0]  (%p269), %s271, %s275, %s274, %s257, 128, 128, 8
        $region32: #{tpu_custom_call.1} parent=19 // pred_fallthru
          _
        // Predicated region
        $region33: #{tpu_custom_call.1} parent=19 // pred_check
          %p280 = pneg %p137
        $region34: #{tpu_custom_call.1} parent=19 // pred_check_branch
          %282 = sbr.rel (%p280) target = $region36
        $region35: #{tpu_custom_call.1} parent=19 // pred_region
          %s283 = sand.u32 %s18, 1
          %s284 = scalar_lea.sflag [#allocation3], %s283
          %s285 = sand.u32 %s127, 1
          %s286 = smul.addr %s285, 16
          %s287 = scalar_lea.vmem [#allocation9], %s286
          %s288 = smul.u32 2, %s18
          %s289 = ssub.s32 3, %s288
          %p290 = scmp.lt.s32.totalorder %s289, 2
          %s291 = scalar_select %p290, %s289, 2
          %s292 = smul.u32 128, %s291
          %s294 = ssub.s32 256, %s292
          %295 = vsyncadd %s284, %s294
          %p296 = scmp.ne.s32.totalorder 0, %s292
          %s297 = smul.addr %s288, 128
          %s298 = scalar_lea.hbm %s4, %s297
          %s299 = smul.u32 8, %s291
          %s300 = sshll.u32 %s287, 4
          %s301 = int_to_ptr.vmem [resolvable:$true] %s300
          %s302 = sshll.u32 %s299, 4
          %306 = dma.hbm_to_vmem [thread:$0]  (%p296), %s298, %s302, %s301, %s284, 128, 128, 8
        $region36: #{tpu_custom_call.1} parent=19 // pred_fallthru
          _
      $region20: #{tpu_custom_call.1} parent=5 // pred_fallthru
        _
      %p307 = scmp.le.s32.totalorder 1, %s18
      %p308 = scmp.lt.s32.totalorder %s18, 3
      %p309 = pnand %p307, %p308
      %p310 = pneg %p309
      // Predicated region
      $region37: #{tpu_custom_call.1} parent=5 // pred_check
        _
      $region38: #{tpu_custom_call.1} parent=5 // pred_check_branch
        %312 = sbr.rel (%p309) target = $region40
      $region39: #{tpu_custom_call.1} parent=5 // pred_region
        %s313 = ssub.s32 %s18, 1
        %s314 = sand.u32 %s23, 1
        %s315 = scalar_lea.sflag [#allocation3], %s314
        %s316 = sand.u32 %s31, 1
        %s317 = smul.addr %s316, 16
        %s318 = scalar_lea.vmem [#allocation2], %s317
        // Predicated region
        $region41: #{tpu_custom_call.1} parent=39 // pred_check
          %p319 = pneg %p44
        $region42: #{tpu_custom_call.1} parent=39 // pred_check_branch
          %321 = sbr.rel (%p319) target = $region44
        $region43: #{tpu_custom_call.1} parent=39 // pred_region
          %322 = dma.done %s315, 256
        $region44: #{tpu_custom_call.1} parent=39 // pred_fallthru
          _
        // Predicated region
        $region45: #{tpu_custom_call.1} parent=39 // pred_check
          %p323 = pneg %p65
        $region46: #{tpu_custom_call.1} parent=39 // pred_check_branch
          %325 = sbr.rel (%p323) target = $region48
        $region47: #{tpu_custom_call.1} parent=39 // pred_region
          %326 = dma.done [#allocation6], 128
        $region48: #{tpu_custom_call.1} parent=39 // pred_fallthru
          _
        %s327 = sand.u32 %s23, 1
        %s328 = scalar_lea.sflag [#allocation3], %s327
        %s329 = sand.u32 %s78, 1
        %s330 = smul.addr %s329, 16
        %s331 = scalar_lea.vmem [#allocation7], %s330
        // Predicated region
        $region49: #{tpu_custom_call.1} parent=39 // pred_check
          %p332 = pneg %p91
        $region50: #{tpu_custom_call.1} parent=39 // pred_check_branch
          %334 = sbr.rel (%p332) target = $region52
        $region51: #{tpu_custom_call.1} parent=39 // pred_region
          %335 = dma.done %s328, 256
        $region52: #{tpu_custom_call.1} parent=39 // pred_fallthru
          _
        %s336 = sand.u32 %s23, 1
        %s337 = scalar_lea.sflag [#allocation3], %s336
        %s338 = sand.u32 %s104, 1
        %s339 = smul.addr %s338, 16
        %s340 = scalar_lea.vmem [#allocation8], %s339
        // Predicated region
        $region53: #{tpu_custom_call.1} parent=39 // pred_check
          %p341 = pneg %p117
        $region54: #{tpu_custom_call.1} parent=39 // pred_check_branch
          %343 = sbr.rel (%p341) target = $region56
        $region55: #{tpu_custom_call.1} parent=39 // pred_region
          %344 = dma.done %s337, 256
        $region56: #{tpu_custom_call.1} parent=39 // pred_fallthru
          _
        %s345 = sand.u32 %s23, 1
        %s346 = scalar_lea.sflag [#allocation3], %s345
        %s347 = sand.u32 %s130, 1
        %s348 = smul.addr %s347, 16
        %s349 = scalar_lea.vmem [#allocation9], %s348
        // Predicated region
        $region57: #{tpu_custom_call.1} parent=39 // pred_check
          %p350 = pneg %p143
        $region58: #{tpu_custom_call.1} parent=39 // pred_check_branch
          %352 = sbr.rel (%p350) target = $region60
        $region59: #{tpu_custom_call.1} parent=39 // pred_region
          %353 = dma.done %s346, 256
        $region60: #{tpu_custom_call.1} parent=39 // pred_fallthru
          _
        %s354 = sand.u32 %s23, 1
        %s355 = scalar_lea.sflag [#allocation3], %s354
        %s356 = sand.u32 %s31, 1
        %s357 = smul.addr %s356, 16
        %s358 = scalar_lea.vmem [#allocation2], %s357
        %p359 = pneg %p44
        %p360 = pneg %p41
        %p361 = pneg %p65
        %p362 = pneg %p62
        %s363 = sand.u32 %s23, 1
        %s364 = scalar_lea.sflag [#allocation3], %s363
        %s365 = sand.u32 %s78, 1
        %s366 = smul.addr %s365, 16
        %s367 = scalar_lea.vmem [#allocation7], %s366
        %p368 = pneg %p91
        %p369 = pneg %p88
        %s370 = sand.u32 %s23, 1
        %s371 = scalar_lea.sflag [#allocation3], %s370
        %s372 = sand.u32 %s104, 1
        %s373 = smul.addr %s372, 16
        %s374 = scalar_lea.vmem [#allocation8], %s373
        %p375 = pneg %p117
        %p376 = pneg %p114
        %s377 = sand.u32 %s23, 1
        %s378 = scalar_lea.sflag [#allocation3], %s377
        %s379 = sand.u32 %s130, 1
        %s380 = smul.addr %s379, 16
        %s381 = scalar_lea.vmem [#allocation9], %s380
        %p382 = pneg %p143
        %p383 = pneg %p140
        %p384 = pneg %p169
        %p385 = pneg %p166
        %s386 = sand.u32 %s156, 1
        %s387 = scalar_lea.sflag [#allocation4], %s386
        %s388 = sand.u32 %s156, 1
        %s389 = smul.addr %s388, 8
        %s390 = scalar_lea.vmem [#allocation10], %s389
        %s391 = smul.u32 2, %s23
        %s392 = ssub.s32 3, %s391
        %p393 = scmp.lt.s32.totalorder %s392, 2
        %s394 = scalar_select %p393, %s392, 2
        %s395 = smul.u32 128, %s394
        %s396 = smul.u32 2, %s23
        %s397 = ssub.s32 3, %s396
        %p398 = scmp.lt.s32.totalorder %s397, 2
        %s399 = scalar_select %p398, %s397, 2
        %s400 = smul.u32 128, %s399
        %s401 = smul.u32 2, %s23
        %s402 = ssub.s32 3, %s401
        %p403 = scmp.lt.s32.totalorder %s402, 2
        %s404 = scalar_select %p403, %s402, 2
        %s405 = smul.u32 128, %s404
        %s406 = smul.u32 2, %s23
        %s407 = ssub.s32 3, %s406
        %p408 = scmp.lt.s32.totalorder %s407, 2
        %s409 = scalar_select %p408, %s407, 2
        %s410 = smul.u32 128, %s409
        %s411 = smul.u32 %s23, 16
        %v412 = vlaneseq
        %v413 = vshrl.u32 %v412, 7
        %v414 = vld [vmem:[%s318] sm:$0xff]
        %v415 = vld [vmem:[#allocation5] sm:$0xff]
        %v416 = vsub.f32 %v415, 1.0
        %v417 = vmul.f32 %v414, %v416
        %v418 = vadd.f32 %v417, 1.0
        %v419 = vsub.f32 1.0, %v414
        %v420 = vld [vmem:[%s331] sm:$0xff]
        %v421 = vand.u32 2147483647, %v420
        %v422 = vsub.f32 0.0, %v421
        %v423 = vmul.f32 %v422, 1.442695
        %v424 = vpow.pop %v423
        %v425 = vadd.f32 %v424, 1.0
        %v426 = vlog2.pop %v425
        %v427 = vmul.f32 %v426, 0.6931472
        %v428 = vmul.f32 -0.5, %v424
        %v429 = vadd.f32 %v428, 1.0
        %v430 = vmul.f32 %v429, %v424
        %v431 = vand.u32 2147483647, %v424
        %vm432 = vcmp.lt.f32.partialorder %v431, 0.0004427343
        %v433 = vsel %vm432, %v430, %v427
        %v434 = vsub.f32 0.0, %v420
        %v435 = vmax.f32 %v434, 0.0
        %v436 = vadd.f32 %v433, %v435
        %v437 = vmul.f32 %v436, %v418
        %v438 = vmul.f32 %v420, %v419
        %v439 = vadd.f32 %v437, %v438
        %v440 = vmul.f32 %v439, 0.5
        %v441 = vld [vmem:[%s340] sm:$0xff]
        %v442 = vand.u32 2147483647, %v441
        %v443 = vsub.f32 0.0, %v442
        %v444 = vmul.f32 %v443, 1.442695
        %v445 = vpow.pop %v444
        %v446 = vadd.f32 %v445, 1.0
        %v447 = vlog2.pop %v446
        %v448 = vmul.f32 %v447, 0.6931472
        %v449 = vmul.f32 -0.5, %v445
        %v450 = vadd.f32 %v449, 1.0
        %v451 = vmul.f32 %v450, %v445
        %v452 = vand.u32 2147483647, %v445
        %vm453 = vcmp.lt.f32.partialorder %v452, 0.0004427343
        %v454 = vsel %vm453, %v451, %v448
        %v455 = vsub.f32 0.0, %v441
        %v456 = vmax.f32 %v455, 0.0
        %v457 = vadd.f32 %v454, %v456
        %v458 = vmul.f32 %v457, %v418
        %v459 = vmul.f32 %v441, %v419
        %v460 = vadd.f32 %v458, %v459
        %v461 = vadd.f32 %v440, %v460
        %v462 = vld [vmem:[%s349] sm:$0xff]
        %v463 = vand.u32 2147483647, %v462
        %v464 = vsub.f32 0.0, %v463
        %v465 = vmul.f32 %v464, 1.442695
        %v466 = vpow.pop %v465
        %v467 = vadd.f32 %v466, 1.0
        %v468 = vlog2.pop %v467
        %v469 = vmul.f32 %v468, 0.6931472
        %v470 = vmul.f32 -0.5, %v466
        %v471 = vadd.f32 %v470, 1.0
        %v472 = vmul.f32 %v471, %v466
        %v473 = vand.u32 2147483647, %v466
        %vm474 = vcmp.lt.f32.partialorder %v473, 0.0004427343
        %v475 = vsel %vm474, %v472, %v469
        %v476 = vsub.f32 0.0, %v462
        %v477 = vmax.f32 %v476, 0.0
        %v478 = vadd.f32 %v475, %v477
        %v479 = vmul.f32 %v478, %v418
        %v480 = vmul.f32 %v462, %v419
        %v481 = vadd.f32 %v479, %v480
        %v482 = vmul.f32 %v481, 0.25
        %v483 = vadd.f32 %v461, %v482
        %s484 = sadd.s32 %s411, 0
        %v485 = vstv %s484
        %v486 = vadd.s32 %v485, %v413
        %vm487 = vcmp.lt.s32.totalorder %v486, 18
        %v488 = vsel %vm487, %v483, 0.0
        %v489 = vadd.f32 %v488, 0.0
        %s490 = scalar_lea.vmem %s318, 8 [#allocation2]
        %v491 = vld [vmem:[%s490] sm:$0xff]
        %v492 = vmul.f32 %v491, %v416
        %v493 = vadd.f32 %v492, 1.0
        %v494 = vsub.f32 1.0, %v491
        %s495 = scalar_lea.vmem %s331, 8 [#allocation7]
        %v496 = vld [vmem:[%s495] sm:$0xff]
        %v497 = vand.u32 2147483647, %v496
        %v498 = vsub.f32 0.0, %v497
        %v499 = vmul.f32 %v498, 1.442695
        %v500 = vpow.pop %v499
        %v501 = vadd.f32 %v500, 1.0
        %v502 = vlog2.pop %v501
        %v503 = vmul.f32 %v502, 0.6931472
        %v504 = vmul.f32 -0.5, %v500
        %v505 = vadd.f32 %v504, 1.0
        %v506 = vmul.f32 %v505, %v500
        %v507 = vand.u32 2147483647, %v500
        %vm508 = vcmp.lt.f32.partialorder %v507, 0.0004427343
        %v509 = vsel %vm508, %v506, %v503
        %v510 = vsub.f32 0.0, %v496
        %v511 = vmax.f32 %v510, 0.0
        %v512 = vadd.f32 %v509, %v511
        %v513 = vmul.f32 %v512, %v493
        %v514 = vmul.f32 %v496, %v494
        %v515 = vadd.f32 %v513, %v514
        %v516 = vmul.f32 %v515, 0.5
        %s517 = scalar_lea.vmem %s340, 8 [#allocation8]
        %v518 = vld [vmem:[%s517] sm:$0xff]
        %v519 = vand.u32 2147483647, %v518
        %v520 = vsub.f32 0.0, %v519
        %v521 = vmul.f32 %v520, 1.442695
        %v522 = vpow.pop %v521
        %v523 = vadd.f32 %v522, 1.0
        %v524 = vlog2.pop %v523
        %v525 = vmul.f32 %v524, 0.6931472
        %v526 = vmul.f32 -0.5, %v522
        %v527 = vadd.f32 %v526, 1.0
        %v528 = vmul.f32 %v527, %v522
        %v529 = vand.u32 2147483647, %v522
        %vm530 = vcmp.lt.f32.partialorder %v529, 0.0004427343
        %v531 = vsel %vm530, %v528, %v525
        %v532 = vsub.f32 0.0, %v518
        %v533 = vmax.f32 %v532, 0.0
        %v534 = vadd.f32 %v531, %v533
        %v535 = vmul.f32 %v534, %v493
        %v536 = vmul.f32 %v518, %v494
        %v537 = vadd.f32 %v535, %v536
        %v538 = vadd.f32 %v516, %v537
        %s539 = scalar_lea.vmem %s349, 8 [#allocation9]
        %v540 = vld [vmem:[%s539] sm:$0xff]
        %v541 = vand.u32 2147483647, %v540
        %v542 = vsub.f32 0.0, %v541
        %v543 = vmul.f32 %v542, 1.442695
        %v544 = vpow.pop %v543
        %v545 = vadd.f32 %v544, 1.0
        %v546 = vlog2.pop %v545
        %v547 = vmul.f32 %v546, 0.6931472
        %v548 = vmul.f32 -0.5, %v544
        %v549 = vadd.f32 %v548, 1.0
        %v550 = vmul.f32 %v549, %v544
        %v551 = vand.u32 2147483647, %v544
        %vm552 = vcmp.lt.f32.partialorder %v551, 0.0004427343
        %v553 = vsel %vm552, %v550, %v547
        %v554 = vsub.f32 0.0, %v540
        %v555 = vmax.f32 %v554, 0.0
        %v556 = vadd.f32 %v553, %v555
        %v557 = vmul.f32 %v556, %v493
        %v558 = vmul.f32 %v540, %v494
        %v559 = vadd.f32 %v557, %v558
        %v560 = vmul.f32 %v559, 0.25
        %v561 = vadd.f32 %v538, %v560
        %s562 = sadd.s32 %s411, 8
        %v563 = vstv %s562
        %v564 = vadd.s32 %v563, %v413
        %vm565 = vcmp.lt.s32.totalorder %v564, 18
        %v566 = vsel %vm565, %v561, 0.0
        %v567 = vadd.f32 %v489, %v566
        %568 = vst [vmem:[%s390] sm:$0xff] %v567
        %s569 = sand.u32 %s156, 1
        %s570 = scalar_lea.sflag [#allocation4], %s569
        %s571 = sand.u32 %s156, 1
        %s572 = smul.addr %s571, 8
        %s573 = scalar_lea.vmem [#allocation10], %s572
        // Predicated region
        $region61: #{tpu_custom_call.1} parent=39 // pred_check
          %p574 = pneg %p166
        $region62: #{tpu_custom_call.1} parent=39 // pred_check_branch
          %576 = sbr.rel (%p574) target = $region64
        $region63: #{tpu_custom_call.1} parent=39 // pred_region
          %s578 = ssub.s32 128, 128
          %579 = vsyncadd %s570, %s578
          %s580 = smul.addr %s23, 128
          %s581 = scalar_lea.hbm %s5, %s580
          %s583 = sshll.u32 %s573, 4
          %s584 = int_to_ptr.vmem [resolvable:$true] %s583
          %586 = dma.vmem_to_hbm [thread:$0]  %s584, 128, %s581, %s570
        $region64: #{tpu_custom_call.1} parent=39 // pred_fallthru
          _
      $region40: #{tpu_custom_call.1} parent=5 // pred_fallthru
        _
      %p587 = scmp.le.s32.totalorder 2, %s18
      // Predicated region
      $region65: #{tpu_custom_call.1} parent=5 // pred_check
        %p588 = pneg %p587
      $region66: #{tpu_custom_call.1} parent=5 // pred_check_branch
        %590 = sbr.rel (%p588) target = $region68
      $region67: #{tpu_custom_call.1} parent=5 // pred_region
        %s591 = ssub.s32 %s18, 2
        // Predicated region
        $region69: #{tpu_custom_call.1} parent=67 // pred_check
          %p592 = pneg %p172
        $region70: #{tpu_custom_call.1} parent=67 // pred_check_branch
          %594 = sbr.rel (%p592) target = $region72
        $region71: #{tpu_custom_call.1} parent=67 // pred_region
          %s595 = sand.u32 %s157, 1
          %s596 = scalar_lea.sflag [#allocation4], %s595
          %s597 = sand.u32 %s157, 1
          %s598 = smul.addr %s597, 8
          %s599 = scalar_lea.vmem [#allocation10], %s598
          %600 = dma.done %s596, 128
        $region72: #{tpu_custom_call.1} parent=67 // pred_fallthru
          _
      $region68: #{tpu_custom_call.1} parent=5 // pred_fallthru
        _
    $region6: #{tpu_custom_call.1} parent=1 // loop_footer
      %s22 = sadd.s32 1, %s18
    $region7: #{tpu_custom_call.1} parent=1 // loop_footer_branch
      %17 = sbr.rel target = $region3
    $region8: #{tpu_custom_call.1} parent=1 // loop_exit
      _
    %601 = vsyncpa [#allocation3], 1
    %s602 = scalar_lea.sflag [#allocation3], 1
    %603 = vsyncpa %s602, 1
    %604 = vsyncpa [#allocation6], 1
    %605 = vsyncpa [#allocation4], 1
    %s606 = scalar_lea.sflag [#allocation4], 1
    %607 = vsyncpa %s606, 1

</llo_original>
